<compile_context>
chip_gen: v7x
topology: tpu7x:2x2x1
jax: 0.10.0
libtpu: 0.0.40
codegen_flags: <defaults>
</compile_context>

<pallas_src>
import functools

import jax
import jax.numpy as jnp
from jax import lax
from jax.experimental import pallas as pl
from jax.experimental.pallas import tpu as pltpu


def _sf_kernel(x_ref, o_ref, *scratch, radius):
    # x_ref block: (tile_b, c, h, w) in the input's native dtype (unpadded W).
    tile_b, c, h, w = x_ref.shape
    xs_ref = scratch[0]                       # (h, w_pad) f32 lane-dense staging
    wp = xs_ref.shape[-1]
    halo_ref = scratch[1] if radius > 0 else None

    # Loop-invariant constants / masks, hoisted out of the batch & channel
    # loops (JAX does not CSE broadcast_in_dim).
    zero_hwp = jnp.zeros((h, wp), jnp.float32)
    row_ge1 = lax.broadcasted_iota(jnp.int32, (h, wp), 0) >= 1
    col_lt_w = lax.broadcasted_iota(jnp.int32, (h, wp), 1) < w

    # Zero the staging buffer once per invocation: its pad columns [w, wp)
    # stay zero for the whole step (only [:, :w] is ever rewritten), which
    # makes every lane roll below wrap-safe without per-iteration masks.
    xs_ref[...] = zero_hwp
    if radius > 0:
        zrows = jnp.zeros((radius, wp), jnp.float32)
        halo_ref[0:radius, :] = zrows                          # top zero halo
        halo_ref[radius + h:radius + h + radius, :] = zrows    # bottom zero halo

    def batch_body(bi, carry):
        def channel_body(ci, gsum):
            # Stage one channel into the lane-dense zero-padded scratch; cast
            # in-kernel so HBM traffic stays in the native dtype.
            xs_ref[:, 0:w] = x_ref[bi, ci].astype(jnp.float32)
            xv = xs_ref[...]                                   # (h, wp)
            # r_shift[y, x] = x[y, x-1]; wrap at x == 0 reads a zero pad lane.
            r_shift = pltpu.roll(xv, shift=1, axis=1)
            # b_shift[y, x] = x[y-1, x]; only the wrap at y == 0 is masked.
            b_shift = jnp.where(row_ge1, pltpu.roll(xv, shift=1, axis=0), 0.0)
            grad = jnp.sqrt((r_shift - xv) ** 2 + (b_shift - xv) ** 2)
            return gsum + grad

        # Channel sum BEFORE the box filter (linearity) -> box work / c, and
        # streaming channels caps live f32 temporaries at a few (h, wp) tiles.
        gsum = lax.fori_loop(0, c, channel_body, zero_hwp)

        if radius == 0:
            # kernel_size == 1, padding == 0 -> the box conv is the identity.
            o_ref[bi] = gsum[:, 0:w]
            return carry

        # Zero the pad columns once so the wrap-safe lane rolls reproduce the
        # exact zero-padding semantics (only column w is actually non-zero).
        gsum = jnp.where(col_lt_w, gsum, 0.0)

        # Separable box sum, lane (x) axis: wrap-safe rolls, no masks
        # (valid because pad width >= radius and gsum's pad lanes are zero).
        # NOTE: for large radius (>= ~8) a lane cumsum or an MXU matmul against
        # a banded-ones matrix would replace this O(radius) roll chain.
        box_x = gsum
        for dx in range(1, radius + 1):
            box_x = box_x + pltpu.roll(gsum, shift=dx, axis=1)       # f[.., x-dx]
            box_x = box_x + pltpu.roll(gsum, shift=wp - dx, axis=1)  # f[.., x+dx]

        # Sublane (y) axis: zero-halo scratch + static sublane-offset reads.
        halo_ref[radius:radius + h, :] = box_x
        box = halo_ref[0:h, :]
        for dy in range(1, 2 * radius + 1):
            box = box + halo_ref[dy:dy + h, :]

        o_ref[bi] = box[:, 0:w]
        return carry

    lax.fori_loop(0, tile_b, batch_body, 0)


def cal_sf_by_net(x):
    """JAX/Pallas equivalent of cal_sf_by_net.forward (no learnable params)."""
    b, c, h, w = x.shape
    radius = w // 40                      # k_size = input.shape[3] // 40

    # Lane-dense staging width: multiple of 128 with >= max(radius, 1) spare
    # zero lanes so every lane roll in the kernel is wrap-safe.
    spare = max(radius, 1)
    w_pad = ((w + spare + 127) // 128) * 128

    # Batch-block size: fill ~8 MiB of (input + output) per grid step to
    # amortize per-step overhead; keep >= 2 grid steps when b > 1 so both v7x
    # TensorCores get work; no divisibility requirement (Pallas handles the
    # ragged last block).
    per_batch_bytes = c * h * w * x.dtype.itemsize + h * w * 4
    budget = 8 * 1024 * 1024
    tile_b = max(1, min(b, budget // max(per_batch_bytes, 1)))
    if b > 1:
        tile_b = min(tile_b, pl.cdiv(b, 2))
    grid = (pl.cdiv(b, tile_b),)
    # NOTE: for b == 1 the grid has a single step, so one v7x TensorCore idles;
    # banding H (with radius halo rows) would fix that but needs manual DMA.

    scratch_shapes = [pltpu.VMEM((h, w_pad), jnp.float32)]
    if radius > 0:
        scratch_shapes.append(pltpu.VMEM((h + 2 * radius, w_pad), jnp.float32))

    # Scoped-VMEM budget: double-buffered in/out blocks + scratch + headroom,
    # clamped to stay under v7x's 64 MiB physical VMEM per TensorCore.
    scratch_bytes = sum(hh * w_pad * 4
                        for hh in ([h, h + 2 * radius] if radius > 0 else [h]))
    vmem_limit = 2 * tile_b * per_batch_bytes + scratch_bytes + (8 << 20)
    vmem_limit = int(min(max(vmem_limit, 32 << 20), 56 << 20))

    out = pl.pallas_call(
        functools.partial(_sf_kernel, radius=radius),
        out_shape=jax.ShapeDtypeStruct((b, h, w), jnp.float32),
        grid=grid,
        in_specs=[pl.BlockSpec((tile_b, c, h, w), lambda i: (i, 0, 0, 0))],
        out_specs=pl.BlockSpec((tile_b, h, w), lambda i: (i, 0, 0)),
        scratch_shapes=scratch_shapes,
        compiler_params=pltpu.CompilerParams(
            dimension_semantics=("parallel",),
            vmem_limit_bytes=vmem_limit),
    )(x)

    if b == 1:
        out = out[0]  # mimic torch .squeeze() for batch 1 (assumes h, w > 1)
    return out


def _reference_sf(x):
    """Pure-JAX reference mirroring the PyTorch code (for correctness check)."""
    b, c, h, w = x.shape
    radius = w // 40
    xf = x.astype(jnp.float32)
    r_shift = jnp.pad(xf, ((0, 0), (0, 0), (0, 0), (1, 0)))[:, :, :, :w]
    b_shift = jnp.pad(xf, ((0, 0), (0, 0), (1, 0), (0, 0)))[:, :, :h, :]
    grad = jnp.sqrt((r_shift - xf) ** 2 + (b_shift - xf) ** 2)
    k = 2 * radius + 1
    gp = jnp.pad(grad, ((0, 0), (0, 0), (radius, radius), (radius, radius)))
    box = jnp.zeros_like(grad)
    for dy in range(k):
        for dx in range(k):
            box = box + gp[:, :, dy:dy + h, dx:dx + w]
    return jnp.sum(box, axis=1)


if __name__ == "__main__":
    key0, key1 = jax.random.split(jax.random.PRNGKey(0))

    # Case 1: (b, c, h, w) = (2, 4, 40, 40) -> radius = 1 (3x3 box sum).
    x1 = jax.random.normal(key0, (2, 4, 40, 40), dtype=jnp.float32)
    out1 = jax.block_until_ready(cal_sf_by_net(x1))
    ref1 = jax.block_until_ready(_reference_sf(x1))
    assert out1.shape == (2, 40, 40), out1.shape
    assert jnp.allclose(out1, ref1, atol=1e-4, rtol=1e-4), float(
        jnp.max(jnp.abs(out1 - ref1)))

    # Case 2: b == 1 (squeeze path) with w < 40 -> radius = 0 (identity box).
    x2 = jax.random.normal(key1, (1, 3, 16, 32), dtype=jnp.float32)
    out2 = jax.block_until_ready(cal_sf_by_net(x2))
    ref2 = jax.block_until_ready(_reference_sf(x2))[0]
    assert out2.shape == (16, 32), out2.shape
    assert jnp.allclose(out2, ref2, atol=1e-4, rtol=1e-4), float(
        jnp.max(jnp.abs(out2 - ref2)))

    print("KERNEL_OK")
</pallas_src>

<mosaic_0001>
module attributes {stable_mosaic.version = 11 : i64} {
  func.func @_sf_kernel(%arg0: i32, %arg1: memref<1x4x40x40xf32, #tpu.memory_space<vmem>>, %arg2: memref<1x40x40xf32, #tpu.memory_space<vmem>>, %arg3: memref<40x128xf32, #tpu.memory_space<vmem>>, %arg4: memref<42x128xf32, #tpu.memory_space<vmem>>) attributes {dimension_semantics = [#tpu.dimension_semantics<parallel>], iteration_bounds = array<i64: 2>, scalar_prefetch = 0 : i64, scratch_operands = 2 : i64, tpu.core_type = #tpu.core_type<tc>, window_params = [{transform_indices = @transform_0, window_bounds = array<i64: 1, 4, 40, 40>}, {transform_indices = @transform_1, window_bounds = array<i64: 1, 40, 40>}]} {
    %cst = arith.constant 0.000000e+00 : f32
    %0 = vector.broadcast %cst : f32 to vector<40x128xf32>
    %1 = tpu.iota {dimensions = array<i32: 0>} : vector<40x128xi32>
    %c1_i32 = arith.constant 1 : i32
    %2 = vector.broadcast %c1_i32 : i32 to vector<40x128xi32>
    %3 = arith.cmpi sge, %1, %2 : vector<40x128xi32>
    %4 = tpu.iota {dimensions = array<i32: 1>} : vector<40x128xi32>
    %c40_i32 = arith.constant 40 : i32
    %5 = vector.broadcast %c40_i32 : i32 to vector<40x128xi32>
    %6 = arith.cmpi slt, %4, %5 : vector<40x128xi32>
    %c0 = arith.constant 0 : index
    %c0_0 = arith.constant 0 : index
    %7 = vector.load %arg3[%c0, %c0_0] : memref<40x128xf32, #tpu.memory_space<vmem>>, vector<40x128xf32>
    tpu.vector_store %arg3[%c0, %c0_0], %0 {strides = array<i32>} : memref<40x128xf32, #tpu.memory_space<vmem>>, vector<40x128xf32>,
    %cst_1 = arith.constant 0.000000e+00 : f32
    %8 = vector.broadcast %cst_1 : f32 to vector<1x128xf32>
    %c0_2 = arith.constant 0 : index
    %c0_3 = arith.constant 0 : index
    %9 = vector.load %arg4[%c0_2, %c0_3] : memref<42x128xf32, #tpu.memory_space<vmem>>, vector<1x128xf32>
    tpu.vector_store %arg4[%c0_2, %c0_3], %8 {strides = array<i32>} : memref<42x128xf32, #tpu.memory_space<vmem>>, vector<1x128xf32>,
    %c41 = arith.constant 41 : index
    %c0_4 = arith.constant 0 : index
    %10 = vector.load %arg4[%c41, %c0_4] : memref<42x128xf32, #tpu.memory_space<vmem>>, vector<1x128xf32>
    tpu.vector_store %arg4[%c41, %c0_4], %8 {strides = array<i32>} : memref<42x128xf32, #tpu.memory_space<vmem>>, vector<1x128xf32>,
    %c0_i32 = arith.constant 0 : i32
    %c0_i32_5 = arith.constant 0 : i32
    %c4_i32 = arith.constant 4 : i32
    %11 = arith.addi %c0_i32_5, %c4_i32 : i32
    %c1_i32_6 = arith.constant 1 : i32
    %12 = scf.for %arg5 = %c0_i32_5 to %11 step %c1_i32_6 iter_args(%arg6 = %0) -> (vector<40x128xf32>)  : i32 {
      %30 = arith.index_cast %c0_i32 : i32 to index
      %31 = arith.index_cast %arg5 : i32 to index
      %c0_19 = arith.constant 0 : index
      %c0_20 = arith.constant 0 : index
      %32 = vector.load %arg1[%30, %31, %c0_19, %c0_20] : memref<1x4x40x40xf32, #tpu.memory_space<vmem>>, vector<1x1x40x40xf32>
      %33 = vector.shape_cast %32 : vector<1x1x40x40xf32> to vector<40x40xf32>
      %c0_21 = arith.constant 0 : index
      %c0_22 = arith.constant 0 : index
      %34 = vector.load %arg3[%c0_21, %c0_22] : memref<40x128xf32, #tpu.memory_space<vmem>>, vector<40x40xf32>
      tpu.vector_store %arg3[%c0_21, %c0_22], %33 {strides = array<i32>} : memref<40x128xf32, #tpu.memory_space<vmem>>, vector<40x40xf32>,
      %c0_23 = arith.constant 0 : index
      %c0_24 = arith.constant 0 : index
      %35 = vector.load %arg3[%c0_23, %c0_24] : memref<40x128xf32, #tpu.memory_space<vmem>>, vector<40x128xf32>
      %c1_i32_25 = arith.constant 1 : i32
      %36 = tpu.dynamic_rotate %35 by %c1_i32_25 dim 1 : vector<40x128xf32>, i32 -> vector<40x128xf32>
      %c1_i32_26 = arith.constant 1 : i32
      %37 = tpu.dynamic_rotate %35 by %c1_i32_26 dim 0 : vector<40x128xf32>, i32 -> vector<40x128xf32>
      %cst_27 = arith.constant 0.000000e+00 : f32
      %38 = vector.broadcast %cst_27 : f32 to vector<40x128xf32>
      %39 = arith.select %3, %37, %38 : vector<40x128xi1>, vector<40x128xf32>
      %40 = arith.subf %36, %35 : vector<40x128xf32>
      %41 = arith.mulf %40, %40 : vector<40x128xf32>
      %42 = arith.subf %39, %35 : vector<40x128xf32>
      %43 = arith.mulf %42, %42 : vector<40x128xf32>
      %44 = arith.addf %41, %43 : vector<40x128xf32>
      %45 = math.sqrt %44 : vector<40x128xf32>
      %46 = arith.addf %arg6, %45 : vector<40x128xf32>
      scf.yield %46 : vector<40x128xf32>
    }
    %c4_i32_7 = arith.constant 4 : i32
    %cst_8 = arith.constant 0.000000e+00 : f32
    %13 = vector.broadcast %cst_8 : f32 to vector<40x128xf32>
    %14 = arith.select %6, %12, %13 : vector<40x128xi1>, vector<40x128xf32>
    %c1_i32_9 = arith.constant 1 : i32
    %15 = tpu.dynamic_rotate %14 by %c1_i32_9 dim 1 : vector<40x128xf32>, i32 -> vector<40x128xf32>
    %16 = arith.addf %14, %15 : vector<40x128xf32>
    %c127_i32 = arith.constant 127 : i32
    %17 = tpu.dynamic_rotate %14 by %c127_i32 dim 1 : vector<40x128xf32>, i32 -> vector<40x128xf32>
    %18 = arith.addf %16, %17 : vector<40x128xf32>
    %c1 = arith.constant 1 : index
    %c0_10 = arith.constant 0 : index
    %19 = vector.load %arg4[%c1, %c0_10] : memref<42x128xf32, #tpu.memory_space<vmem>>, vector<40x128xf32>
    tpu.vector_store %arg4[%c1, %c0_10], %18 {strides = array<i32>} : memref<42x128xf32, #tpu.memory_space<vmem>>, vector<40x128xf32>,
    %c0_11 = arith.constant 0 : index
    %c0_12 = arith.constant 0 : index
    %20 = vector.load %arg4[%c0_11, %c0_12] : memref<42x128xf32, #tpu.memory_space<vmem>>, vector<40x128xf32>
    %c1_13 = arith.constant 1 : index
    %c0_14 = arith.constant 0 : index
    %21 = vector.load %arg4[%c1_13, %c0_14] : memref<42x128xf32, #tpu.memory_space<vmem>>, vector<40x128xf32>
    %22 = arith.addf %20, %21 : vector<40x128xf32>
    %c2 = arith.constant 2 : index
    %c0_15 = arith.constant 0 : index
    %23 = vector.load %arg4[%c2, %c0_15] : memref<42x128xf32, #tpu.memory_space<vmem>>, vector<40x128xf32>
    %24 = arith.addf %22, %23 : vector<40x128xf32>
    %25 = vector.extract_strided_slice %24 {offsets = [0, 0], sizes = [40, 40], strides = [1, 1]} : vector<40x128xf32> to vector<40x40xf32>
    %26 = arith.index_cast %c0_i32 : i32 to index
    %c0_16 = arith.constant 0 : index
    %c0_17 = arith.constant 0 : index
    %27 = vector.load %arg2[%26, %c0_16, %c0_17] : memref<1x40x40xf32, #tpu.memory_space<vmem>>, vector<1x40x40xf32>
    %28 = vector.shape_cast %27 : vector<1x40x40xf32> to vector<40x40xf32>
    %29 = vector.shape_cast %25 : vector<40x40xf32> to vector<1x40x40xf32>
    tpu.vector_store %arg2[%26, %c0_16, %c0_17], %29 {strides = array<i32>} : memref<1x40x40xf32, #tpu.memory_space<vmem>>, vector<1x40x40xf32>,
    %c1_i32_18 = arith.constant 1 : i32
    return
  }
  func.func @transform_0(%arg0: i32) -> (i32, i32, i32, i32) {
    %c0_i32 = arith.constant 0 : i32
    %c0_i32_0 = arith.constant 0 : i32
    %c0_i32_1 = arith.constant 0 : i32
    %c0_i32_2 = arith.constant 0 : i32
    return %arg0, %c0_i32, %c0_i32_0, %c0_i32_1 : i32, i32, i32, i32
  }
  func.func @transform_1(%arg0: i32) -> (i32, i32, i32) {
    %c0_i32 = arith.constant 0 : i32
    %c0_i32_0 = arith.constant 0 : i32
    %c0_i32_1 = arith.constant 0 : i32
    return %arg0, %c0_i32, %c0_i32_0 : i32, i32, i32
  }
}

</mosaic_0001>

<llo_original>
// kernel: tpu_custom_call.1
$region0: #{tpu_custom_call.1}
  #allocation0 [shape = 'u32[]', space=smem, size = 0x4, offset = 0x4, fixed_abs, tag = 'smem constant byte address 0x4 - core index']
  #allocation1 [shape = 'u32[144,128]{1,0:T(1,128)}', space=vmem, size = 0x12000, scoped, tag = 'internal scratch']
  #allocation2 [shape = 'f32[40,128]{1,0:T(8,128)}', space=vmem, size = 0x5000, scoped, tag = 'scratch operand']
  #allocation3 [shape = 'f32[42,128]{1,0:T(8,128)}', space=vmem, size = 0x6000, scoped, tag = 'scratch operand']
  %s0 = inlined_call_operand.hbm [shape: f32[2,4,40,40], index: 0, kind: input, shape index: {}]
  %s1 = inlined_call_operand.hbm [shape: f32[2,40,40], index: 1, kind: output, shape index: {}]
  %s2 = sld [smem:[#allocation0]]
  $region48: #{tpu_custom_call.1} parent=0
    _
  %s4 = ssub.s32 1, %s2
  %s5 = scalar_select 0, %s4, %s2
  $region1: #{tpu_custom_call.1} parent=0
    #allocation4 [shape = 'u8[163840]{0}', space=vmem, size = 0x28000, scoped, tag = 'input window, operand 0']
    #allocation5 [shape = 's32[2]{0}', space=sflag, size = 0x8, scoped, tag = 'scoped memory for tpu_custom_call.1']
    #allocation6 [shape = 's32[2]{0}', space=sflag, size = 0x8, scoped, tag = 'scoped memory for tpu_custom_call.1']
    #allocation7 [shape = 'u8[40960]{0}', space=vmem, size = 0xa000, scoped, tag = 'output window, operand 0']
    %6 = vsyncpa [#allocation5], 0
    %s7 = scalar_lea.sflag [#allocation5], 1
    %8 = vsyncpa %s7, 0
    %9 = vsyncpa [#allocation6], 0
    %s10 = scalar_lea.sflag [#allocation6], 1
    %11 = vsyncpa %s10, 0
    loop: start=0, step=1, limit=4
    $region2: #{tpu_custom_call.1} parent=1 // loop_pre_header
      _
    $region3: #{tpu_custom_call.1} parent=1 // loop_header
      %s13 = sphi 0, %s17
      %p14 = scmp.ge.s32.totalorder %s13, 4
      %s23 = sphi 0, %s25
      %s26 = sphi 0, %s23
      %s27 = sphi 0, %s26
      %s43 = sphi 0, %s27
      %s49 = sphi 0, %s51
      %s52 = sphi 0, %s49
      %s53 = sphi 0, %s52
      %s69 = sphi 0, %s53
    $region4: #{tpu_custom_call.1} parent=1 // loop_header_branch
      %16 = sbr.rel (%p14) target = $region8
    $region5: #{tpu_custom_call.1} parent=1 // loop_body
      %s18 = ssub.s32 %s13, 1
      %s19 = ssub.s32 %s13, 2
      %s20 = sadd.s32 %s13, 1
      %s21 = ssub.s32 %s13, %s20
      %p22 = scmp.eq.s32.totalorder %s21, 0
      %s24 = sadd.s32 %s23, 1
      %s25 = scalar_select %p22, %s23, %s24
      %p28 = pneg %p22
      %p29 = scmp.eq.s32.totalorder %s13, 1
      %p30 = por %p28, %p29
      %p31 = scmp.ne.s32.totalorder %s23, %s26
      %p32 = scmp.eq.s32.totalorder %s13, 0
      %p33 = por %p31, %p32
      %p34 = scmp.ne.s32.totalorder %s23, %s26
      %p35 = scmp.eq.s32.totalorder %s18, 1
      %p36 = por %p34, %p35
      %p37 = scmp.ne.s32.totalorder %s26, %s27
      %p38 = scmp.eq.s32.totalorder %s18, 0
      %p39 = por %p37, %p38
      %p40 = scmp.ne.s32.totalorder %s26, %s27
      %p41 = scmp.eq.s32.totalorder %s19, 1
      %p42 = por %p40, %p41
      %p44 = scmp.ne.s32.totalorder %s27, %s43
      %p45 = scmp.eq.s32.totalorder %s19, 0
      %p46 = por %p44, %p45
      %s47 = ssub.s32 %s13, %s20
      %p48 = scmp.eq.s32.totalorder %s47, 0
      %s50 = sadd.s32 %s49, 1
      %s51 = scalar_select %p48, %s49, %s50
      %p54 = pneg %p48
      %p55 = scmp.eq.s32.totalorder %s13, 1
      %p56 = por %p54, %p55
      %p57 = scmp.ne.s32.totalorder %s49, %s52
      %p58 = scmp.eq.s32.totalorder %s13, 0
      %p59 = por %p57, %p58
      %p60 = scmp.ne.s32.totalorder %s49, %s52
      %p61 = scmp.eq.s32.totalorder %s18, 1
      %p62 = por %p60, %p61
      %p63 = scmp.ne.s32.totalorder %s52, %s53
      %p64 = scmp.eq.s32.totalorder %s18, 0
      %p65 = por %p63, %p64
      %p66 = scmp.ne.s32.totalorder %s52, %s53
      %p67 = scmp.eq.s32.totalorder %s19, 1
      %p68 = por %p66, %p67
      %p70 = scmp.ne.s32.totalorder %s53, %s69
      %p71 = scmp.eq.s32.totalorder %s19, 0
      %p72 = por %p70, %p71
      %p73 = scmp.le.s32.totalorder 1, %s13
      %p74 = scmp.lt.s32.totalorder %s13, 3
      %p75 = pnand %p73, %p74
      %p76 = pneg %p75
      // Predicated region
      $region9: #{tpu_custom_call.1} parent=5 // pred_check
        _
      $region10: #{tpu_custom_call.1} parent=5 // pred_check_branch
        %78 = sbr.rel (%p75) target = $region12
      $region11: #{tpu_custom_call.1} parent=5 // pred_region
        %s79 = ssub.s32 %s13, 1
      $region12: #{tpu_custom_call.1} parent=5 // pred_fallthru
        _
      %p80 = scmp.lt.s32.totalorder %s13, 2
      // Predicated region
      $region13: #{tpu_custom_call.1} parent=5 // pred_check
        %p81 = pneg %p80
      $region14: #{tpu_custom_call.1} parent=5 // pred_check_branch
        %83 = sbr.rel (%p81) target = $region16
      $region15: #{tpu_custom_call.1} parent=5 // pred_region
        // Predicated region
        $region17: #{tpu_custom_call.1} parent=15 // pred_check
          %p84 = pneg %p33
        $region18: #{tpu_custom_call.1} parent=15 // pred_check_branch
          %86 = sbr.rel (%p84) target = $region20
        $region19: #{tpu_custom_call.1} parent=15 // pred_region
          %s87 = sand.u32 %s23, 1
          %s88 = scalar_lea.sflag [#allocation5], %s87
          %s89 = sand.u32 %s23, 1
          %s90 = smul.addr %s89, 160
          %s91 = scalar_lea.vmem [#allocation4], %s90
          %s93 = ssub.s32 2560, 2560
          %94 = vsyncadd %s88, %s93
          %s95 = smul.addr %s13, 20
          %s96 = smul.addr %s95, 128
          %s97 = scalar_lea.hbm %s0, %s96
          %s98 = sshll.u32 %s91, 4
          %s99 = int_to_ptr.vmem [resolvable:$true] %s98
          %104 = dma.hbm_to_vmem [thread:$0]  %s97, 2560, %s99, %s88, 128, 128, 8
        $region20: #{tpu_custom_call.1} parent=15 // pred_fallthru
          _
      $region16: #{tpu_custom_call.1} parent=5 // pred_fallthru
        _
      %p105 = scmp.le.s32.totalorder 1, %s13
      %p106 = scmp.lt.s32.totalorder %s13, 3
      %p107 = pnand %p105, %p106
      %p108 = pneg %p107
      // Predicated region
      $region21: #{tpu_custom_call.1} parent=5 // pred_check
        _
      $region22: #{tpu_custom_call.1} parent=5 // pred_check_branch
        %110 = sbr.rel (%p107) target = $region24
      $region23: #{tpu_custom_call.1} parent=5 // pred_region
        %s111 = ssub.s32 %s13, 1
        %s112 = sand.u32 %s26, 1
        %s113 = scalar_lea.sflag [#allocation5], %s112
        %s114 = sand.u32 %s26, 1
        %s115 = smul.addr %s114, 160
        %s116 = scalar_lea.vmem [#allocation4], %s115
        // Predicated region
        $region25: #{tpu_custom_call.1} parent=23 // pred_check
          %p117 = pneg %p39
        $region26: #{tpu_custom_call.1} parent=23 // pred_check_branch
          %119 = sbr.rel (%p117) target = $region28
        $region27: #{tpu_custom_call.1} parent=23 // pred_region
          %120 = dma.done %s113, 2560
        $region28: #{tpu_custom_call.1} parent=23 // pred_fallthru
          _
        %s121 = sand.u32 %s26, 1
        %s122 = scalar_lea.sflag [#allocation5], %s121
        %s123 = sand.u32 %s26, 1
        %s124 = smul.addr %s123, 160
        %s125 = scalar_lea.vmem [#allocation4], %s124
        %p126 = pneg %p39
        %p127 = pneg %p36
        %p128 = pneg %p65
        %p129 = pneg %p62
        %s130 = sand.u32 %s52, 1
        %s131 = scalar_lea.sflag [#allocation6], %s130
        %s132 = sand.u32 %s52, 1
        %s133 = smul.addr %s132, 40
        %s134 = scalar_lea.vmem [#allocation7], %s133
        %v135 = vlaneseq
        %v136 = vshrl.u32 %v135, 7
        %v137 = vadd.s32 %v136, 8
        %v138 = vadd.s32 %v136, 16
        %v139 = vadd.s32 %v136, 24
        %v140 = vadd.s32 %v136, 32
        %vm141 = vcmp.ge.s32.totalorder %v136, 1
        %vm142 = vcmp.ge.s32.totalorder %v137, 1
        %vm143 = vcmp.ge.s32.totalorder %v138, 1
        %vm144 = vcmp.ge.s32.totalorder %v139, 1
        %vm145 = vcmp.ge.s32.totalorder %v140, 1
        %v146 = vlaneseq
        %v147 = vand.u32 %v146, 127
        %vm148 = vcmp.lt.s32.totalorder %v147, 40
        %149 = vst [vmem:[#allocation2] sm:$0xff] 0.0
        %150 = vst [vmem:[#allocation2 + $0x8] sm:$0xff] 0.0
        %151 = vst [vmem:[#allocation2 + $0x10] sm:$0xff] 0.0
        %152 = vst [vmem:[#allocation2 + $0x18] sm:$0xff] 0.0
        %153 = vst [vmem:[#allocation2 + $0x20] sm:$0xff] 0.0
        %154 = vst [vmem:[#allocation3] sm:$0x1] 0.0
        %155 = vst [vmem:[#allocation3 + $0x29] sm:$0x1] 0.0
        loop: start=0, step=1, limit=4
        $region29: #{tpu_custom_call.1} parent=23 // loop_pre_header
          _
        $region30: #{tpu_custom_call.1} parent=23 // loop_header
          %s157 = sphi 0, %s161
          %p158 = scmp.ge.s32.totalorder %s157, 4
          %v162 = vphi 0.0, %v271
          %v163 = vphi 0.0, %v272
          %v164 = vphi 0.0, %v273
          %v165 = vphi 0.0, %v274
          %v166 = vphi 0.0, %v275
        $region31: #{tpu_custom_call.1} parent=23 // loop_header_branch
          %160 = sbr.rel (%p158) target = $region35
        $region32: #{tpu_custom_call.1} parent=23 // loop_body
          %s167 = smul.u32 %s157, 40
          %s168 = scalar_lea.vmem %s116, %s167 [#allocation4]
          %v169 = vld [vmem:[%s168] sm:$0xff]
          %v170 = vld [vmem:[%s168 + $0x8] sm:$0xff]
          %v171 = vld [vmem:[%s168 + $0x10] sm:$0xff]
          %v172 = vld [vmem:[%s168 + $0x18] sm:$0xff]
          %v173 = vld [vmem:[%s168 + $0x20] sm:$0xff]
          %vm174 = vcmask 326656
          %175 = vst.msk [vmem:[#allocation2] sm:$0xff] %vm174, %v169
          %176 = vst.msk [vmem:[#allocation2 + $0x8] sm:$0xff] %vm174, %v170
          %177 = vst.msk [vmem:[#allocation2 + $0x10] sm:$0xff] %vm174, %v171
          %178 = vst.msk [vmem:[#allocation2 + $0x18] sm:$0xff] %vm174, %v172
          %179 = vst.msk [vmem:[#allocation2 + $0x20] sm:$0xff] %vm174, %v173
          %v180 = vld [vmem:[#allocation2] sm:$0xff]
          %v181 = vld [vmem:[#allocation2 + $0x8] sm:$0xff]
          %v182 = vld [vmem:[#allocation2 + $0x10] sm:$0xff]
          %v183 = vld [vmem:[#allocation2 + $0x18] sm:$0xff]
          %v184 = vld [vmem:[#allocation2 + $0x20] sm:$0xff]
          %185 = vrot.lane.b32.xlu0 %v180, 1
          %v186 = vpop.permute.xlu0 %185
          %187 = vrot.lane.b32.xlu0 %v181, 1
          %v188 = vpop.permute.xlu0 %187
          %189 = vrot.lane.b32.xlu0 %v182, 1
          %v190 = vpop.permute.xlu0 %189
          %191 = vrot.lane.b32.xlu0 %v183, 1
          %v192 = vpop.permute.xlu0 %191
          %193 = vrot.lane.b32.xlu0 %v184, 1
          %v194 = vpop.permute.xlu0 %193
          %v195 = vrot.slane %v180, 7
          %v196 = vrot.slane %v181, 7
          %v197 = vrot.slane %v182, 7
          %v198 = vrot.slane %v183, 7
          %v199 = vrot.slane %v184, 7
          %vm200 = vcmp.lt.s32.totalorder %v136, 1
          %v201 = vsel %vm200, %v198, %v199
          %v202 = vsel %vm200, %v197, %v198
          %v203 = vsel %vm200, %v196, %v197
          %v204 = vsel %vm200, %v195, %v196
          %v205 = vsel %vm200, %v199, %v195
          %v206 = vsel %vm141, %v205, 0.0
          %v207 = vsel %vm142, %v204, 0.0
          %v208 = vsel %vm143, %v203, 0.0
          %v209 = vsel %vm144, %v202, 0.0
          %v210 = vsel %vm145, %v201, 0.0
          %v211 = vsub.f32 %v186, %v180
          %v212 = vsub.f32 %v188, %v181
          %v213 = vsub.f32 %v190, %v182
          %v214 = vsub.f32 %v192, %v183
          %v215 = vsub.f32 %v194, %v184
          %v216 = vmul.f32 %v211, %v211
          %v217 = vmul.f32 %v212, %v212
          %v218 = vmul.f32 %v213, %v213
          %v219 = vmul.f32 %v214, %v214
          %v220 = vmul.f32 %v215, %v215
          %v221 = vsub.f32 %v206, %v180
          %v222 = vsub.f32 %v207, %v181
          %v223 = vsub.f32 %v208, %v182
          %v224 = vsub.f32 %v209, %v183
          %v225 = vsub.f32 %v210, %v184
          %v226 = vmul.f32 %v221, %v221
          %v227 = vmul.f32 %v222, %v222
          %v228 = vmul.f32 %v223, %v223
          %v229 = vmul.f32 %v224, %v224
          %v230 = vmul.f32 %v225, %v225
          %v231 = vadd.f32 %v216, %v226
          %v232 = vadd.f32 %v217, %v227
          %v233 = vadd.f32 %v218, %v228
          %v234 = vadd.f32 %v219, %v229
          %v235 = vadd.f32 %v220, %v230
          %v236 = vrsqrt.pop %v231
          %v237 = vmul.f32 %v231, %v236
          %vm238 = vcmp.eq.f32.partialorder %v231, inf
          %v239 = vsel %vm238, %v231, %v237
          %vm240 = vcmp.eq.f32.partialorder %v231, 0.0
          %v241 = vand.u32 %v231, 2147483648
          %v242 = vsel %vm240, %v241, %v239
          %v243 = vrsqrt.pop %v232
          %v244 = vmul.f32 %v232, %v243
          %vm245 = vcmp.eq.f32.partialorder %v232, inf
          %v246 = vsel %vm245, %v232, %v244
          %vm247 = vcmp.eq.f32.partialorder %v232, 0.0
          %v248 = vand.u32 %v232, 2147483648
          %v249 = vsel %vm247, %v248, %v246
          %v250 = vrsqrt.pop %v233
          %v251 = vmul.f32 %v233, %v250
          %vm252 = vcmp.eq.f32.partialorder %v233, inf
          %v253 = vsel %vm252, %v233, %v251
          %vm254 = vcmp.eq.f32.partialorder %v233, 0.0
          %v255 = vand.u32 %v233, 2147483648
          %v256 = vsel %vm254, %v255, %v253
          %v257 = vrsqrt.pop %v234
          %v258 = vmul.f32 %v234, %v257
          %vm259 = vcmp.eq.f32.partialorder %v234, inf
          %v260 = vsel %vm259, %v234, %v258
          %vm261 = vcmp.eq.f32.partialorder %v234, 0.0
          %v262 = vand.u32 %v234, 2147483648
          %v263 = vsel %vm261, %v262, %v260
          %v264 = vrsqrt.pop %v235
          %v265 = vmul.f32 %v235, %v264
          %vm266 = vcmp.eq.f32.partialorder %v235, inf
          %v267 = vsel %vm266, %v235, %v265
          %vm268 = vcmp.eq.f32.partialorder %v235, 0.0
          %v269 = vand.u32 %v235, 2147483648
          %v270 = vsel %vm268, %v269, %v267
          %v271 = vadd.f32 %v162, %v242
          %v272 = vadd.f32 %v163, %v249
          %v273 = vadd.f32 %v164, %v256
          %v274 = vadd.f32 %v165, %v263
          %v275 = vadd.f32 %v166, %v270
        $region33: #{tpu_custom_call.1} parent=23 // loop_footer
          %s161 = sadd.s32 1, %s157
        $region34: #{tpu_custom_call.1} parent=23 // loop_footer_branch
          %156 = sbr.rel target = $region30
        $region35: #{tpu_custom_call.1} parent=23 // loop_exit
          _
        %v276 = vsel %vm148, %v162, 0.0
        %v277 = vsel %vm148, %v163, 0.0
        %v278 = vsel %vm148, %v164, 0.0
        %v279 = vsel %vm148, %v165, 0.0
        %v280 = vsel %vm148, %v166, 0.0
        %281 = vrot.lane.b32.xlu0 %v276, 1
        %v282 = vpop.permute.xlu0 %281
        %283 = vrot.lane.b32.xlu0 %v277, 1
        %v284 = vpop.permute.xlu0 %283
        %285 = vrot.lane.b32.xlu0 %v278, 1
        %v286 = vpop.permute.xlu0 %285
        %287 = vrot.lane.b32.xlu0 %v279, 1
        %v288 = vpop.permute.xlu0 %287
        %289 = vrot.lane.b32.xlu0 %v280, 1
        %v290 = vpop.permute.xlu0 %289
        %v291 = vadd.f32 %v276, %v282
        %v292 = vadd.f32 %v277, %v284
        %v293 = vadd.f32 %v278, %v286
        %v294 = vadd.f32 %v279, %v288
        %v295 = vadd.f32 %v280, %v290
        %296 = vrot.lane.b32.xlu0 %v276, 127
        %v297 = vpop.permute.xlu0 %296
        %298 = vrot.lane.b32.xlu0 %v277, 127
        %v299 = vpop.permute.xlu0 %298
        %300 = vrot.lane.b32.xlu0 %v278, 127
        %v301 = vpop.permute.xlu0 %300
        %302 = vrot.lane.b32.xlu0 %v279, 127
        %v303 = vpop.permute.xlu0 %302
        %304 = vrot.lane.b32.xlu0 %v280, 127
        %v305 = vpop.permute.xlu0 %304
        %v306 = vadd.f32 %v291, %v297
        %v307 = vadd.f32 %v292, %v299
        %v308 = vadd.f32 %v293, %v301
        %v309 = vadd.f32 %v294, %v303
        %v310 = vadd.f32 %v295, %v305
        %311 = vst [vmem:[#allocation3 + $0x1] sm:$0xff] %v306
        %312 = vst [vmem:[#allocation3 + $0x9] sm:$0xff] %v307
        %313 = vst [vmem:[#allocation3 + $0x11] sm:$0xff] %v308
        %314 = vst [vmem:[#allocation3 + $0x19] sm:$0xff] %v309
        %315 = vst [vmem:[#allocation3 + $0x21] sm:$0xff] %v310
        %v316 = vld [vmem:[#allocation3] sm:$0xff]
        %v317 = vld [vmem:[#allocation3 + $0x8] sm:$0xff]
        %v318 = vld [vmem:[#allocation3 + $0x10] sm:$0xff]
        %v319 = vld [vmem:[#allocation3 + $0x18] sm:$0xff]
        %v320 = vld [vmem:[#allocation3 + $0x20] sm:$0xff]
        %v321 = vld [vmem:[#allocation3 + $0x1] sm:$0xff]
        %v322 = vld [vmem:[#allocation3 + $0x9] sm:$0xff]
        %v323 = vld [vmem:[#allocation3 + $0x11] sm:$0xff]
        %v324 = vld [vmem:[#allocation3 + $0x19] sm:$0xff]
        %v325 = vld [vmem:[#allocation3 + $0x21] sm:$0xff]
        %v326 = vadd.f32 %v316, %v321
        %v327 = vadd.f32 %v317, %v322
        %v328 = vadd.f32 %v318, %v323
        %v329 = vadd.f32 %v319, %v324
        %v330 = vadd.f32 %v320, %v325
        %v331 = vld [vmem:[#allocation3 + $0x2] sm:$0xff]
        %v332 = vld [vmem:[#allocation3 + $0xa] sm:$0xff]
        %v333 = vld [vmem:[#allocation3 + $0x12] sm:$0xff]
        %v334 = vld [vmem:[#allocation3 + $0x1a] sm:$0xff]
        %v335 = vld [vmem:[#allocation3 + $0x22] sm:$0xff]
        %v336 = vadd.f32 %v326, %v331
        %v337 = vadd.f32 %v327, %v332
        %v338 = vadd.f32 %v328, %v333
        %v339 = vadd.f32 %v329, %v334
        %v340 = vadd.f32 %v330, %v335
        %vm341 = vcmask 326656
        %342 = vst.msk [vmem:[%s134] sm:$0xff] %vm341, %v336
        %343 = vst.msk [vmem:[%s134 + $0x8] sm:$0xff] %vm341, %v337
        %344 = vst.msk [vmem:[%s134 + $0x10] sm:$0xff] %vm341, %v338
        %345 = vst.msk [vmem:[%s134 + $0x18] sm:$0xff] %vm341, %v339
        %346 = vst.msk [vmem:[%s134 + $0x20] sm:$0xff] %vm341, %v340
        %s347 = sand.u32 %s52, 1
        %s348 = scalar_lea.sflag [#allocation6], %s347
        %s349 = sand.u32 %s52, 1
        %s350 = smul.addr %s349, 40
        %s351 = scalar_lea.vmem [#allocation7], %s350
        // Predicated region
        $region36: #{tpu_custom_call.1} parent=23 // pred_check
          %p352 = pneg %p62
        $region37: #{tpu_custom_call.1} parent=23 // pred_check_branch
          %354 = sbr.rel (%p352) target = $region39
        $region38: #{tpu_custom_call.1} parent=23 // pred_region
          %s356 = ssub.s32 640, 640
          %357 = vsyncadd %s348, %s356
          %s358 = smul.addr %s18, 5
          %s359 = smul.addr %s358, 128
          %s360 = scalar_lea.hbm %s1, %s359
          %s361 = sshll.u32 %s351, 4
          %s362 = int_to_ptr.vmem [resolvable:$true] %s361
          %367 = dma.vmem_to_hbm [thread:$0]  %s362, 640, %s360, %s348, 128, 128, 8
        $region39: #{tpu_custom_call.1} parent=23 // pred_fallthru
          _
      $region24: #{tpu_custom_call.1} parent=5 // pred_fallthru
        _
      %p368 = scmp.le.s32.totalorder 2, %s13
      // Predicated region
      $region40: #{tpu_custom_call.1} parent=5 // pred_check
        %p369 = pneg %p368
      $region41: #{tpu_custom_call.1} parent=5 // pred_check_branch
        %371 = sbr.rel (%p369) target = $region43
      $region42: #{tpu_custom_call.1} parent=5 // pred_region
        %s372 = ssub.s32 %s13, 2
        // Predicated region
        $region44: #{tpu_custom_call.1} parent=42 // pred_check
          %p373 = pneg %p68
        $region45: #{tpu_custom_call.1} parent=42 // pred_check_branch
          %375 = sbr.rel (%p373) target = $region47
        $region46: #{tpu_custom_call.1} parent=42 // pred_region
          %s376 = sand.u32 %s53, 1
          %s377 = scalar_lea.sflag [#allocation6], %s376
          %s378 = sand.u32 %s53, 1
          %s379 = smul.addr %s378, 40
          %s380 = scalar_lea.vmem [#allocation7], %s379
          %381 = dma.done %s377, 640
        $region47: #{tpu_custom_call.1} parent=42 // pred_fallthru
          _
      $region43: #{tpu_custom_call.1} parent=5 // pred_fallthru
        _
    $region6: #{tpu_custom_call.1} parent=1 // loop_footer
      %s17 = sadd.s32 1, %s13
    $region7: #{tpu_custom_call.1} parent=1 // loop_footer_branch
      %12 = sbr.rel target = $region3
    $region8: #{tpu_custom_call.1} parent=1 // loop_exit
      _
    %382 = vsyncpa [#allocation5], 1
    %s383 = scalar_lea.sflag [#allocation5], 1
    %384 = vsyncpa %s383, 1
    %385 = vsyncpa [#allocation6], 1
    %s386 = scalar_lea.sflag [#allocation6], 1
    %387 = vsyncpa %s386, 1

</llo_original>
